<compile_context>
chip_gen: v7x
topology: tpu7x:2x2x1
jax: 0.10.0
libtpu: 0.0.40
codegen_flags: <defaults>
</compile_context>

<pallas_src>
import functools
import math

import jax
import jax.numpy as jnp
from jax.experimental import pallas as pl
from jax.experimental.pallas import tpu as pltpu


_LANE = 128
_VMEM_DATA_BUDGET = 32 * 1024 * 1024   # double-buffered in+out bytes per grid step
_VMEM_LIMIT_BYTES = 48 * 1024 * 1024   # scoped VMEM request (safe on v5e/v6e/v7x)


def _sublane(itemsize: int) -> int:
    # Rows per sublane group for packed dtypes: f32 -> 8, bf16 -> 16, int8/fp8 -> 32.
    return {4: 8, 2: 16, 1: 32}.get(itemsize, 8)


def _pick_tile_rows(rows: int, lane_width: int, in_bytes: int, out_bytes: int) -> int:
    """VMEM-budget-derived row tile: multiple of the sublane packing, and small
    enough that the grid has >= 2 steps whenever rows allow a clean split."""
    sub = max(_sublane(in_bytes), _sublane(out_bytes))
    per_row = lane_width * (in_bytes + out_bytes)
    cap = _VMEM_DATA_BUDGET // (2 * per_row)          # rows whose 2x(in+out) fit budget
    cap = max(sub, (cap // sub) * sub)
    tile = min(1024, cap)
    half = ((rows // 2) // sub) * sub                  # largest sublane-aligned half
    if half >= sub:
        tile = min(tile, half)                         # guarantee >= 2 grid steps
    else:
        tile = rows                                    # too small to split: full block
    return tile


# ----------------------------- kernels ------------------------------------- #

def _rmsnorm_kernel(x_ref, scale_ref, o_ref, *, eps: float):
    # x_ref: (TR, D) input rows, scale_ref: (1, D) f32, o_ref: (TR, D) out.
    inv_d = 1.0 / x_ref.shape[-1]
    x = x_ref[...].astype(jnp.float32)
    sum_sq = jnp.sum(x * x, axis=-1, keepdims=True)            # XLU reduce
    inv_rms = jax.lax.rsqrt(sum_sq * inv_d + eps)              # EUP rsqrt
    # Re-read the tile (3 vld/cycle) instead of keeping the f32 copy live
    # across the reduction -> lower vreg pressure at large D.
    x2 = x_ref[...].astype(jnp.float32)
    o_ref[...] = (x2 * inv_rms * scale_ref[...]).astype(o_ref.dtype)


def _rmsnorm_noscale_kernel(x_ref, o_ref, *, eps: float):
    inv_d = 1.0 / x_ref.shape[-1]
    x = x_ref[...].astype(jnp.float32)
    sum_sq = jnp.sum(x * x, axis=-1, keepdims=True)
    inv_rms = jax.lax.rsqrt(sum_sq * inv_d + eps)
    x2 = x_ref[...].astype(jnp.float32)
    o_ref[...] = (x2 * inv_rms).astype(o_ref.dtype)


def _rmsnorm_packed_kernel(x_ref, seg_ref, scale_ref, o_ref, *, eps: float, d: int):
    # x_ref: (TR, 128) — each physical row holds 128//d logical rows of width d.
    # seg_ref: (128, 128) block-diagonal ones; (x*x) @ seg broadcasts each
    # logical row's sum-of-squares across its own d lanes (MXU slot, essentially
    # free relative to the mem-bound load/store path).
    x = x_ref[...].astype(jnp.float32)
    sum_sq = jnp.dot(x * x, seg_ref[...], preferred_element_type=jnp.float32)
    inv_rms = jax.lax.rsqrt(sum_sq * (1.0 / d) + eps)
    x2 = x_ref[...].astype(jnp.float32)
    o_ref[...] = (x2 * inv_rms * scale_ref[...]).astype(o_ref.dtype)


def _rmsnorm_packed_noscale_kernel(x_ref, seg_ref, o_ref, *, eps: float, d: int):
    x = x_ref[...].astype(jnp.float32)
    sum_sq = jnp.dot(x * x, seg_ref[...], preferred_element_type=jnp.float32)
    inv_rms = jax.lax.rsqrt(sum_sq * (1.0 / d) + eps)
    x2 = x_ref[...].astype(jnp.float32)
    o_ref[...] = (x2 * inv_rms).astype(o_ref.dtype)


# ----------------------------- wrapper -------------------------------------- #

def rms_norm(x, scale=None, *, eps: float = 1e-6):
    """RMSNorm over the last dim of `x`; `scale` is a (D,) array or None."""
    orig_shape = x.shape
    d = orig_shape[-1]
    rows = int(math.prod(orig_shape[:-1])) if len(orig_shape) > 1 else 1
    in_bytes = x.dtype.itemsize
    out_bytes = in_bytes                      # output is cast back to x.dtype
    has_scale = scale is not None
    if has_scale:
        scale = scale.reshape(d).astype(jnp.float32)

    # Lane-dense packing for tiny feature dims (D < 128, 128 % D == 0).
    pack = _LANE // d if (d < _LANE and _LANE % d == 0) else 1
    packed = pack > 1 and rows % pack == 0
    # TODO(synk): D < 128 with 128 % D != 0 (or rows % pack != 0) falls back to
    # the plain path with partially masked lane stores.

    compiler_params = pltpu.CompilerParams(
        dimension_semantics=("parallel",),
        vmem_limit_bytes=_VMEM_LIMIT_BYTES,
    )

    if packed:
        rows_p = rows // pack
        x2d = x.reshape(rows_p, _LANE)
        idx = jnp.arange(_LANE)
        seg = (idx[:, None] // d == idx[None, :] // d).astype(jnp.float32)  # (128,128)
        tile_r = _pick_tile_rows(rows_p, _LANE, in_bytes, out_bytes)
        grid = (pl.cdiv(rows_p, tile_r),)

        in_specs = [
            pl.BlockSpec((tile_r, _LANE), lambda i: (i, 0)),
            pl.BlockSpec((_LANE, _LANE), lambda i: (0, 0)),
        ]
        args = [x2d, seg]
        if has_scale:
            in_specs.append(pl.BlockSpec((1, _LANE), lambda i: (0, 0)))
            args.append(jnp.tile(scale, pack).reshape(1, _LANE))
            kernel = functools.partial(_rmsnorm_packed_kernel, eps=eps, d=d)
        else:
            kernel = functools.partial(_rmsnorm_packed_noscale_kernel, eps=eps, d=d)

        cost = pl.CostEstimate(
            flops=3 * rows * d + 2 * rows_p * _LANE * _LANE,
            transcendentals=rows,
            bytes_accessed=rows * d * (in_bytes + out_bytes) + (4 * d if has_scale else 0),
        )
        out = pl.pallas_call(
            kernel,
            out_shape=jax.ShapeDtypeStruct((rows_p, _LANE), x.dtype),
            grid=grid,
            in_specs=in_specs,
            out_specs=pl.BlockSpec((tile_r, _LANE), lambda i: (i, 0)),
            compiler_params=compiler_params,
            cost_estimate=cost,
        )(*args)
        return out.reshape(orig_shape)

    # Plain path: (rows, D) tiles, reduction along the lane axis.
    x2d = x.reshape(rows, d)
    tile_r = _pick_tile_rows(rows, d, in_bytes, out_bytes)
    grid = (pl.cdiv(rows, tile_r),)

    in_specs = [pl.BlockSpec((tile_r, d), lambda i: (i, 0))]
    args = [x2d]
    if has_scale:
        in_specs.append(pl.BlockSpec((1, d), lambda i: (0, 0)))
        args.append(scale.reshape(1, d))
        kernel = functools.partial(_rmsnorm_kernel, eps=eps)
    else:
        kernel = functools.partial(_rmsnorm_noscale_kernel, eps=eps)

    cost = pl.CostEstimate(
        flops=3 * rows * d,
        transcendentals=rows,
        bytes_accessed=rows * d * (in_bytes + out_bytes) + (4 * d if has_scale else 0),
    )
    out = pl.pallas_call(
        kernel,
        out_shape=jax.ShapeDtypeStruct((rows, d), x.dtype),
        grid=grid,
        in_specs=in_specs,
        out_specs=pl.BlockSpec((tile_r, d), lambda i: (i, 0)),
        compiler_params=compiler_params,
        cost_estimate=cost,
    )(*args)
    return out.reshape(orig_shape)


# ----------------------------- reference / demo ----------------------------- #

def reference(x, scale=None, eps=1e-6):
    x32 = x.astype(jnp.float32)
    ms = jnp.mean(x32 * x32, axis=-1, keepdims=True)
    y = x32 * jax.lax.rsqrt(ms + eps)
    if scale is not None:
        y = y * scale.astype(jnp.float32)
    return y.astype(x.dtype)


if __name__ == "__main__":
    key = jax.random.PRNGKey(0)
    k_x, k_s, k_x2 = jax.random.split(key, 3)
    eps = 1e-6

    # Case 1: tiny feature dim (D=32) -> lane-dense packed path, with scale.
    B, S, D = 2, 8, 32
    x = jax.random.normal(k_x, (B, S, D), dtype=jnp.float32)
    scale = 1.0 + 0.1 * jax.random.normal(k_s, (D,), dtype=jnp.float32)
    out = jax.block_until_ready(rms_norm(x, scale, eps=eps))
    ref = reference(x, scale, eps=eps)
    assert out.shape == x.shape and out.dtype == x.dtype
    assert jnp.allclose(out, ref, atol=1e-5, rtol=1e-5), (
        f"packed path max abs err {jnp.max(jnp.abs(out - ref))}"
    )

    # Case 2: lane-dense feature dim (D=256), scale=False branch of the module.
    x2 = jax.random.normal(k_x2, (4, 16, 256), dtype=jnp.float32)
    out2 = jax.block_until_ready(rms_norm(x2, None, eps=eps))
    ref2 = reference(x2, None, eps=eps)
    assert out2.shape == x2.shape and out2.dtype == x2.dtype
    assert jnp.allclose(out2, ref2, atol=1e-5, rtol=1e-5), (
        f"plain path max abs err {jnp.max(jnp.abs(out2 - ref2))}"
    )

    print("KERNEL_OK")
</pallas_src>

<mosaic_0001>
module attributes {stable_mosaic.version = 11 : i64} {
  func.func @_rmsnorm_packed_kernel(%arg0: i32, %arg1: memref<4x128xf32, #tpu.memory_space<vmem>>, %arg2: memref<128x128xf32, #tpu.memory_space<vmem>>, %arg3: memref<1x128xf32, #tpu.memory_space<vmem>>, %arg4: memref<4x128xf32, #tpu.memory_space<vmem>>) attributes {dimension_semantics = [#tpu.dimension_semantics<parallel>], iteration_bounds = array<i64: 1>, scalar_prefetch = 0 : i64, scratch_operands = 0 : i64, tpu.core_type = #tpu.core_type<tc>, window_params = [{transform_indices = @transform_0, window_bounds = array<i64: 4, 128>}, {pipeline_mode = #tpu.pipeline_mode<synchronous>, transform_indices = @transform_1, window_bounds = array<i64: 128, 128>}, {pipeline_mode = #tpu.pipeline_mode<synchronous>, transform_indices = @transform_2, window_bounds = array<i64: 1, 128>}, {transform_indices = @transform_3, window_bounds = array<i64: 4, 128>}]} {
    %c0 = arith.constant 0 : index
    %c0_0 = arith.constant 0 : index
    %0 = vector.load %arg1[%c0, %c0_0] : memref<4x128xf32, #tpu.memory_space<vmem>>, vector<4x128xf32>
    %1 = arith.mulf %0, %0 : vector<4x128xf32>
    %c0_1 = arith.constant 0 : index
    %c0_2 = arith.constant 0 : index
    %2 = vector.load %arg2[%c0_1, %c0_2] : memref<128x128xf32, #tpu.memory_space<vmem>>, vector<128x128xf32>
    %cst = arith.constant dense<0.000000e+00> : vector<4x128xf32>
    %3 = tpu.matmul %1, %2, %cst {dimension_numbers = #tpu.dot_dimension_numbers<[1], [0], [0], [1], [0, 0, 1, 1], [], []>} : vector<4x128xf32>, vector<128x128xf32>, vector<4x128xf32> -> vector<4x128xf32>
    %cst_3 = arith.constant 3.125000e-02 : f32
    %4 = vector.broadcast %cst_3 : f32 to vector<4x128xf32>
    %5 = arith.mulf %3, %4 : vector<4x128xf32>
    %cst_4 = arith.constant 9.99999997E-7 : f32
    %6 = vector.broadcast %cst_4 : f32 to vector<4x128xf32>
    %7 = arith.addf %5, %6 : vector<4x128xf32>
    %8 = math.rsqrt %7 : vector<4x128xf32>
    %c0_5 = arith.constant 0 : index
    %c0_6 = arith.constant 0 : index
    %9 = vector.load %arg1[%c0_5, %c0_6] : memref<4x128xf32, #tpu.memory_space<vmem>>, vector<4x128xf32>
    %10 = arith.mulf %9, %8 : vector<4x128xf32>
    %c0_7 = arith.constant 0 : index
    %c0_8 = arith.constant 0 : index
    %11 = vector.load %arg3[%c0_7, %c0_8] : memref<1x128xf32, #tpu.memory_space<vmem>>, vector<1x128xf32>
    %12 = vector.broadcast %11 : vector<1x128xf32> to vector<4x128xf32>
    %13 = arith.mulf %10, %12 : vector<4x128xf32>
    %c0_9 = arith.constant 0 : index
    %c0_10 = arith.constant 0 : index
    %14 = vector.load %arg4[%c0_9, %c0_10] : memref<4x128xf32, #tpu.memory_space<vmem>>, vector<4x128xf32>
    tpu.vector_store %arg4[%c0_9, %c0_10], %13 {strides = array<i32>} : memref<4x128xf32, #tpu.memory_space<vmem>>, vector<4x128xf32>,
    return
  }
  func.func @transform_0(%arg0: i32) -> (i32, i32) {
    %c0_i32 = arith.constant 0 : i32
    %c0_i32_0 = arith.constant 0 : i32
    return %arg0, %c0_i32 : i32, i32
  }
  func.func @transform_1(%arg0: i32) -> (i32, i32) {
    %c0_i32 = arith.constant 0 : i32
    %c0_i32_0 = arith.constant 0 : i32
    %c0_i32_1 = arith.constant 0 : i32
    return %c0_i32, %c0_i32_0 : i32, i32
  }
  func.func @transform_2(%arg0: i32) -> (i32, i32) {
    %c0_i32 = arith.constant 0 : i32
    %c0_i32_0 = arith.constant 0 : i32
    %c0_i32_1 = arith.constant 0 : i32
    return %c0_i32, %c0_i32_0 : i32, i32
  }
  func.func @transform_3(%arg0: i32) -> (i32, i32) {
    %c0_i32 = arith.constant 0 : i32
    %c0_i32_0 = arith.constant 0 : i32
    return %arg0, %c0_i32 : i32, i32
  }
}

</mosaic_0001>

<llo_original>
// kernel: tpu_custom_call.1
$region0: #{tpu_custom_call.1}
  #allocation0 [shape = 'u32[]', space=smem, size = 0x4, offset = 0x4, fixed_abs, tag = 'smem constant byte address 0x4 - core index']
  #allocation1 [shape = 'u32[144,128]{1,0:T(1,128)}', space=vmem, size = 0x12000, scoped, tag = 'internal scratch']
  %s0 = inlined_call_operand.hbm [shape: f32[4,128], index: 0, kind: input, shape index: {}]
  %s1 = inlined_call_operand.hbm [shape: f32[128,128], index: 1, kind: input, shape index: {}]
  %s2 = inlined_call_operand.vmem [shape: f32[1,128], index: 2, kind: input, shape index: {}]
  %s3 = inlined_call_operand.hbm [shape: f32[4,128], index: 3, kind: output, shape index: {}]
  %s4 = sld [smem:[#allocation0]]
  $region30: #{tpu_custom_call.1} parent=0
    _
  %s6 = ssub.s32 1, %s4
  %s7 = scalar_select 0, %s6, %s4
  $region1: #{tpu_custom_call.1} parent=0
    #allocation2 [shape = 'u8[2048]{0}', space=vmem, size = 0x800, scoped, tag = 'input window, operand 0, single buffered']
    #allocation3 [shape = 's32[1]{0}', space=sflag, size = 0x4, scoped, tag = 'scoped memory for tpu_custom_call.1']
    #allocation4 [shape = 's32[1]{0}', space=sflag, size = 0x4, scoped, tag = 'scoped memory for tpu_custom_call.1']
    #allocation5 [shape = 'u8[65536]{0}', space=vmem, size = 0x10000, scoped, tag = 'input window, operand 1, single buffered']
    #allocation6 [shape = 's32[1]{0}', space=sflag, size = 0x4, scoped, tag = 'scoped memory for tpu_custom_call.1']
    #allocation7 [shape = 'u8[2048]{0}', space=vmem, size = 0x800, scoped, tag = 'output window, operand 0, single buffered']
    %8 = vsyncpa [#allocation3], 0
    %9 = vsyncpa [#allocation6], 0
    %10 = vsyncpa [#allocation4], 0
    // Predicated region
    $region2: #{tpu_custom_call.1} parent=1 // pred_check
      _
    $region3: #{tpu_custom_call.1} parent=1 // pred_check_branch
      %12 = sbr.rel (0) target = $region5
    $region4: #{tpu_custom_call.1} parent=1 // pred_region
      %s14 = ssub.s32 64, 64
      %15 = vsyncadd [#allocation3], %s14
      %s17 = sshll.u32 [#allocation2], 4
      %s18 = int_to_ptr.vmem [resolvable:$true] %s17
      %20 = dma.hbm_to_vmem [thread:$0]  %s0, 64, %s18, [#allocation3]
    $region5: #{tpu_custom_call.1} parent=1 // pred_fallthru
      _
    // Predicated region
    $region6: #{tpu_custom_call.1} parent=1 // pred_check
      _
    $region7: #{tpu_custom_call.1} parent=1 // pred_check_branch
      %22 = sbr.rel (0) target = $region9
    $region8: #{tpu_custom_call.1} parent=1 // pred_region
      %s24 = ssub.s32 2048, 2048
      %25 = vsyncadd [#allocation6], %s24
      %s26 = sshll.u32 [#allocation5], 4
      %s27 = int_to_ptr.vmem [resolvable:$true] %s26
      %32 = dma.hbm_to_vmem [thread:$0]  %s1, 2048, %s27, [#allocation6], 128, 128, 8
    $region9: #{tpu_custom_call.1} parent=1 // pred_fallthru
      _
    // Predicated region
    $region10: #{tpu_custom_call.1} parent=1 // pred_check
      _
    $region11: #{tpu_custom_call.1} parent=1 // pred_check_branch
      %34 = sbr.rel (0) target = $region13
    $region12: #{tpu_custom_call.1} parent=1 // pred_region
      _
    $region13: #{tpu_custom_call.1} parent=1 // pred_fallthru
      _
    // Predicated region
    $region14: #{tpu_custom_call.1} parent=1 // pred_check
      _
    $region15: #{tpu_custom_call.1} parent=1 // pred_check_branch
      %36 = sbr.rel (0) target = $region17
    $region16: #{tpu_custom_call.1} parent=1 // pred_region
      %37 = dma.done [#allocation3], 64
    $region17: #{tpu_custom_call.1} parent=1 // pred_fallthru
      _
    // Predicated region
    $region18: #{tpu_custom_call.1} parent=1 // pred_check
      _
    $region19: #{tpu_custom_call.1} parent=1 // pred_check_branch
      %39 = sbr.rel (0) target = $region21
    $region20: #{tpu_custom_call.1} parent=1 // pred_region
      %40 = dma.done [#allocation6], 2048
    $region21: #{tpu_custom_call.1} parent=1 // pred_fallthru
      _
    %v41 = vld [vmem:[#allocation2] sm:$0xf]
    %v42 = vmul.f32 %v41, %v41
    %v43 = vld [vmem:[#allocation5] sm:$0xff]
    %v44 = vld [vmem:[#allocation5 + $0x8] sm:$0xff]
    %v45 = vld [vmem:[#allocation5 + $0x10] sm:$0xff]
    %v46 = vld [vmem:[#allocation5 + $0x18] sm:$0xff]
    %v47 = vld [vmem:[#allocation5 + $0x20] sm:$0xff]
    %v48 = vld [vmem:[#allocation5 + $0x28] sm:$0xff]
    %v49 = vld [vmem:[#allocation5 + $0x30] sm:$0xff]
    %v50 = vld [vmem:[#allocation5 + $0x38] sm:$0xff]
    %v51 = vld [vmem:[#allocation5 + $0x40] sm:$0xff]
    %v52 = vld [vmem:[#allocation5 + $0x48] sm:$0xff]
    %v53 = vld [vmem:[#allocation5 + $0x50] sm:$0xff]
    %v54 = vld [vmem:[#allocation5 + $0x58] sm:$0xff]
    %v55 = vld [vmem:[#allocation5 + $0x60] sm:$0xff]
    %v56 = vld [vmem:[#allocation5 + $0x68] sm:$0xff]
    %v57 = vld [vmem:[#allocation5 + $0x70] sm:$0xff]
    %v58 = vld [vmem:[#allocation5 + $0x78] sm:$0xff]
    %59 = vmatprep.subr.mxu0 0.0
    %60 = vmatpush1.msra.mxu0 %v43
    %61 = vmatprep.subr.mxu0 0.0
    %62 = vmatpush1.msra.mxu0 %v44
    %63 = vmatprep.subr.mxu0 0.0
    %64 = vmatpush1.msra.mxu0 %v45
    %65 = vmatprep.subr.mxu0 0.0
    %66 = vmatpush1.msra.mxu0 %v46
    %67 = vmatprep.subr.mxu0 0.0
    %68 = vmatpush1.msra.mxu0 %v47
    %69 = vmatprep.subr.mxu0 0.0
    %70 = vmatpush1.msra.mxu0 %v48
    %71 = vmatprep.subr.mxu0 0.0
    %72 = vmatpush1.msra.mxu0 %v49
    %73 = vmatprep.subr.mxu0 0.0
    %74 = vmatpush1.msra.mxu0 %v50
    %75 = vmatprep.subr.mxu0 0.0
    %76 = vmatpush1.msra.mxu0 %v51
    %77 = vmatprep.subr.mxu0 0.0
    %78 = vmatpush1.msra.mxu0 %v52
    %79 = vmatprep.subr.mxu0 0.0
    %80 = vmatpush1.msra.mxu0 %v53
    %81 = vmatprep.subr.mxu0 0.0
    %82 = vmatpush1.msra.mxu0 %v54
    %83 = vmatprep.subr.mxu0 0.0
    %84 = vmatpush1.msra.mxu0 %v55
    %85 = vmatprep.subr.mxu0 0.0
    %86 = vmatpush1.msra.mxu0 %v56
    %87 = vmatprep.subr.mxu0 0.0
    %88 = vmatpush1.msra.mxu0 %v57
    %89 = vmatprep.subr.mxu0 0.0
    %90 = vmatpush1.msra.mxu0 %v58
    %91 = vmatprep.subr.mxu0 0.0
    %92 = vmatpush1.msra.mxu0 0.0
    %93 = vmatprep.subr.mxu0 0.0
    %94 = vmatpush1.msra.mxu0 0.0
    %95 = vmatprep.subr.mxu0 0.0
    %96 = vmatpush1.msra.mxu0 0.0
    %97 = vmatprep.subr.mxu0 0.0
    %98 = vmatpush1.msra.mxu0 0.0
    %99 = vmatprep.subr.mxu0 0.0
    %100 = vmatpush1.msra.mxu0 0.0
    %101 = vmatprep.subr.mxu0 0.0
    %102 = vmatpush1.msra.mxu0 0.0
    %103 = vmatprep.subr.mxu0 0.0
    %104 = vmatpush1.msra.mxu0 0.0
    %105 = vmatprep.subr.mxu0 0.0
    %106 = vmatpush1.msra.mxu0 0.0
    %107 = vmatprep.subr.mxu0 0.0
    %108 = vmatpush1.msra.mxu0 0.0
    %109 = vmatprep.subr.mxu0 0.0
    %110 = vmatpush1.msra.mxu0 0.0
    %111 = vmatprep.subr.mxu0 0.0
    %112 = vmatpush1.msra.mxu0 0.0
    %113 = vmatprep.subr.mxu0 0.0
    %114 = vmatpush1.msra.mxu0 0.0
    %115 = vmatprep.subr.mxu0 0.0
    %116 = vmatpush1.msra.mxu0 0.0
    %117 = vmatprep.subr.mxu0 0.0
    %118 = vmatpush1.msra.mxu0 0.0
    %119 = vmatprep.subr.mxu0 0.0
    %120 = vmatpush1.msra.mxu0 0.0
    %121 = vmatprep.subr.mxu0 0.0
    %122 = vmatpush1.msra.mxu0 0.0
    %123 = vmatprep.mubr.f32.mxu0 0.0
    %124 = vmatmul.mubr.f32.gmra.mrb[0].mxu0 %v42
    %v125 = vpop.f32.mrb[0].mxu0
    %v126 = vadd.f32 0.0, %v125
    %v127 = vpop.f32.mrb[0].mxu0
    %128 = vdwg.mxu0
    %v129 = vmul.f32 %v126, 0.03125
    %v130 = vadd.f32 %v129, 1e-06
    %v131 = vrsqrt.pop %v130
    %v132 = vmul.f32 %v41, %v131
    %v133 = vld [vmem:[%s2] sm:$0x1]
    %v135 = vlaneseq
    %v136 = vshrl.u32 %v135, 7
    %v137 = vsub.s32 0, %v136
    %v138 = vrot.slane %v133, %v137
    %v140 = vmul.f32 %v132, %v138
    %141 = vst [vmem:[#allocation7] sm:$0xf] %v140
    // Predicated region
    $region22: #{tpu_custom_call.1} parent=1 // pred_check
      _
    $region23: #{tpu_custom_call.1} parent=1 // pred_check_branch
      %143 = sbr.rel (0) target = $region25
    $region24: #{tpu_custom_call.1} parent=1 // pred_region
      %s145 = ssub.s32 64, 64
      %146 = vsyncadd [#allocation4], %s145
      %s148 = sshll.u32 [#allocation7], 4
      %s149 = int_to_ptr.vmem [resolvable:$true] %s148
      %151 = dma.vmem_to_hbm [thread:$0]  %s149, 64, %s3, [#allocation4]
    $region25: #{tpu_custom_call.1} parent=1 // pred_fallthru
      _
    // Predicated region
    $region26: #{tpu_custom_call.1} parent=1 // pred_check
      _
    $region27: #{tpu_custom_call.1} parent=1 // pred_check_branch
      %153 = sbr.rel (0) target = $region29
    $region28: #{tpu_custom_call.1} parent=1 // pred_region
      %154 = dma.done [#allocation4], 64
    $region29: #{tpu_custom_call.1} parent=1 // pred_fallthru
      _
    %155 = vsyncpa [#allocation3], 1
    %156 = vsyncpa [#allocation6], 1
    %157 = vsyncpa [#allocation4], 1

</llo_original>
